<compile_context>
chip_gen: v7x
topology: tpu7x:2x2x1
jax: 0.10.0
libtpu: 0.0.40
codegen_flags: <defaults>
</compile_context>

<pallas_src>
import jax
import jax.numpy as jnp
from jax.experimental import pallas as pl
from jax.experimental.pallas import tpu as pltpu


def _round_up(n, m):
    return ((n + m - 1) // m) * m


def _f_act(x):
    # fid == 0: relu(x)^2 - relu(x - 0.5)^2   (note: F_act(0) == 0)
    r = jnp.maximum(x, 0.0)
    s = jnp.maximum(x - 0.5, 0.0)
    return r * r - s * s


def _make_kernel(n_layers):
    def kernel(*refs):
        # refs: x, we[0..L-1], be[0..L-1], wd[0..L-1] (pre-transposed), bd[0..L-1], e_out, y_out
        x_ref = refs[0]
        we = refs[1:1 + n_layers]
        be = refs[1 + n_layers:1 + 2 * n_layers]
        wd = refs[1 + 2 * n_layers:1 + 3 * n_layers]
        bd = refs[1 + 3 * n_layers:1 + 4 * n_layers]
        e_ref = refs[1 + 4 * n_layers]
        o_ref = refs[2 + 4 * n_layers]

        # Encoder chain (all intermediates stay in registers).
        h = x_ref[...]
        for i in range(n_layers - 1):
            h = _f_act(jnp.dot(h, we[i][...], preferred_element_type=jnp.float32)
                       + be[i][...])
        h = (jnp.dot(h, we[n_layers - 1][...], preferred_element_type=jnp.float32)
             + be[n_layers - 1][...])
        e_ref[...] = h.astype(e_ref.dtype)

        # Decoder chain with tied (pre-transposed) weights, reusing `h` in registers.
        out = h
        for i in range(n_layers - 1, 0, -1):
            out = _f_act(jnp.dot(out, wd[i][...], preferred_element_type=jnp.float32)
                         + bd[i][...])
        out = (jnp.dot(out, wd[0][...], preferred_element_type=jnp.float32)
               + bd[0][...])
        o_ref[...] = out.astype(o_ref.dtype)

    return kernel


def _derive_tiling(b_flat, pdims, vmem_budget_bytes):
    """Pick the biggest f32 row tile that fits the VMEM budget (cap 512)."""
    # Per-row pipelined bytes: x tile + e tile + y tile (f32).
    bytes_per_row = 4 * (pdims[0] + pdims[-1] + pdims[0])
    # Grid-invariant params, counted once (enc + pre-transposed dec copies + biases).
    w_bytes = 2 * 4 * sum(pdims[i] * pdims[i + 1] for i in range(len(pdims) - 1))
    b_bytes = 4 * (sum(pdims[1:]) + sum(pdims[:-1]))
    budget = max(vmem_budget_bytes - (w_bytes + b_bytes), 1 << 20)
    t = budget // (2 * bytes_per_row)            # x/e/y tiles are double-buffered
    t = max(8, min(512, (t // 8) * 8))
    tile_m = int(min(t, _round_up(b_flat, 8)))   # don't pad tiny batches to 512
    per_step = 2 * tile_m * bytes_per_row
    vmem_limit = int(min(max(2 * (per_step + w_bytes + b_bytes), 32 << 20), 56 << 20))
    return tile_m, vmem_limit


def simple_ae_forward(x, enc_w, enc_b, dec_b, *, tile_m=None,
                      vmem_budget_bytes=20 << 20):
    """SimpleAE.forward.

    x     : any shape with prod(shape) % nVar == 0   (PyTorch .view(-1, nVar))
    enc_w : list of nL weights, enc_w[i] shape (n_nodes[i], n_nodes[i+1])
    enc_b : list of nL biases,  enc_b[i] shape (1, n_nodes[i+1])  (or (n_nodes[i+1],))
    dec_b : list of nL biases,  dec_b[i] shape (1, n_nodes[i])    (or (n_nodes[i],))
    returns (e, y) with e: (-1, nC), y: x.shape
    """
    orig_shape = x.shape
    nL = len(enc_w)
    dims = [enc_w[0].shape[0]] + [w.shape[1] for w in enc_w]     # n_nodes
    nVar, nC = dims[0], dims[-1]
    pdims = [_round_up(d, 128) for d in dims]                    # lane-dense widths

    x_flat = x.reshape(-1, nVar).astype(jnp.float32)
    b_flat = x_flat.shape[0]

    # --- zero-pad parameters to lane-dense widths (exact: F_act(0) == 0) ---
    we_pad, wd_pad, be_pad, bd_pad = [], [], [], []
    for i in range(nL):
        w = enc_w[i].astype(jnp.float32)
        wp = jnp.zeros((pdims[i], pdims[i + 1]), jnp.float32)
        wp = wp.at[:dims[i], :dims[i + 1]].set(w)
        we_pad.append(wp)
        wd_pad.append(jnp.transpose(wp))                         # tied, pre-transposed
        be = enc_b[i].reshape(1, -1).astype(jnp.float32)
        bd = dec_b[i].reshape(1, -1).astype(jnp.float32)
        be_pad.append(jnp.zeros((1, pdims[i + 1]), jnp.float32).at[:, :dims[i + 1]].set(be))
        bd_pad.append(jnp.zeros((1, pdims[i]), jnp.float32).at[:, :dims[i]].set(bd))

    # --- tiling ---
    auto_tile, vmem_limit = _derive_tiling(b_flat, pdims, vmem_budget_bytes)
    if tile_m is None:
        tile_m = auto_tile
    tile_m = max(8, _round_up(tile_m, 8))
    b_pad = _round_up(b_flat, tile_m)

    # Zero-pad rows (ragged batch) and columns (nVar -> pdims[0]).
    x_in = jnp.zeros((b_pad, pdims[0]), jnp.float32).at[:b_flat, :nVar].set(x_flat)

    grid = (b_pad // tile_m,)

    # --- specs ---
    in_specs = [pl.BlockSpec((tile_m, pdims[0]), lambda i: (i, 0))]            # x tile
    in_specs += [pl.BlockSpec((pdims[li], pdims[li + 1]), lambda i: (0, 0))    # enc W
                 for li in range(nL)]
    in_specs += [pl.BlockSpec((1, pdims[li + 1]), lambda i: (0, 0))            # enc b
                 for li in range(nL)]
    in_specs += [pl.BlockSpec((pdims[li + 1], pdims[li]), lambda i: (0, 0))    # dec W (pre-T)
                 for li in range(nL)]
    in_specs += [pl.BlockSpec((1, pdims[li]), lambda i: (0, 0))                # dec b
                 for li in range(nL)]
    out_specs = [
        pl.BlockSpec((tile_m, pdims[-1]), lambda i: (i, 0)),                   # e (lane-dense)
        pl.BlockSpec((tile_m, pdims[0]), lambda i: (i, 0)),                    # y
    ]

    e_full, y_full = pl.pallas_call(
        _make_kernel(nL),
        out_shape=(
            jax.ShapeDtypeStruct((b_pad, pdims[-1]), jnp.float32),
            jax.ShapeDtypeStruct((b_pad, pdims[0]), jnp.float32),
        ),
        grid_spec=pltpu.PrefetchScalarGridSpec(
            num_scalar_prefetch=0,
            grid=grid,
            in_specs=in_specs,
            out_specs=out_specs,
        ),
        compiler_params=pltpu.CompilerParams(
            dimension_semantics=("parallel",),
            vmem_limit_bytes=vmem_limit,
        ),
    )(x_in, *we_pad, *be_pad, *wd_pad, *bd_pad)

    e_out = e_full[:b_flat, :nC]
    y_out = y_full[:b_flat, :nVar].reshape(orig_shape)
    return e_out, y_out


def _ref_forward(x, enc_w, enc_b, dec_b):
    """Pure-JAX reference matching SimpleAE.forward exactly (fid = 0)."""
    nL = len(enc_w)
    nVar = enc_w[0].shape[0]
    h = x.reshape(-1, nVar)
    for i in range(nL - 1):
        h = _f_act(h @ enc_w[i] + enc_b[i].reshape(1, -1))
    e = h @ enc_w[nL - 1] + enc_b[nL - 1].reshape(1, -1)
    out = e
    for i in range(nL - 1, 0, -1):
        out = _f_act(out @ enc_w[i].T + dec_b[i].reshape(1, -1))
    out = out @ enc_w[0].T + dec_b[0].reshape(1, -1)
    return e, out.reshape(x.shape)


if __name__ == "__main__":
    # Small shapes consistent with the module: input (2, 4, 16, 16),
    # n_nodes = [256, 128, 32]  ->  nVar = 256 (so x.view(-1, 256) -> (8, 256)),
    # one hidden layer of 128, code size nC = 32, nL = 2.
    B, C, H, W = 2, 4, 16, 16
    n_nodes = [H * W, 128, 32]
    nL = len(n_nodes) - 1

    key = jax.random.PRNGKey(0)
    keys = jax.random.split(key, 1 + 3 * nL)
    x = jax.random.normal(keys[0], (B, C, H, W), dtype=jnp.float32)

    enc_w, enc_b, dec_b = [], [], []
    for i in range(nL):
        fan_in, fan_out = n_nodes[i], n_nodes[i + 1]
        bound = float(jnp.sqrt(6.0 / (fan_in + fan_out)))        # xavier_uniform_
        enc_w.append(jax.random.uniform(keys[1 + 3 * i], (fan_in, fan_out),
                                        jnp.float32, -bound, bound))
        # The module inits biases to zero; use small deterministic non-zero values
        # here so the bias-add path is actually exercised by the check.
        enc_b.append(0.1 * jax.random.normal(keys[2 + 3 * i], (1, fan_out), jnp.float32))
        dec_b.append(0.1 * jax.random.normal(keys[3 + 3 * i], (1, fan_in), jnp.float32))

    fwd = jax.jit(simple_ae_forward)
    e_out, y_out = fwd(x, enc_w, enc_b, dec_b)
    jax.block_until_ready((e_out, y_out))

    e_ref, y_ref = _ref_forward(x, enc_w, enc_b, dec_b)
    assert e_out.shape == (B * C * H * W // n_nodes[0], n_nodes[-1])
    assert y_out.shape == x.shape
    assert jnp.allclose(e_out, e_ref, atol=2e-3, rtol=2e-3), \
        float(jnp.max(jnp.abs(e_out - e_ref)))
    assert jnp.allclose(y_out, y_ref, atol=2e-3, rtol=2e-3), \
        float(jnp.max(jnp.abs(y_out - y_ref)))

    print("KERNEL_OK")
</pallas_src>

<mosaic_0001>
module attributes {stable_mosaic.version = 11 : i64} {
  func.func @kernel(%arg0: i32, %arg1: memref<8x256xf32, #tpu.memory_space<vmem>>, %arg2: memref<256x128xf32, #tpu.memory_space<vmem>>, %arg3: memref<128x128xf32, #tpu.memory_space<vmem>>, %arg4: memref<1x128xf32, #tpu.memory_space<vmem>>, %arg5: memref<1x128xf32, #tpu.memory_space<vmem>>, %arg6: memref<128x256xf32, #tpu.memory_space<vmem>>, %arg7: memref<128x128xf32, #tpu.memory_space<vmem>>, %arg8: memref<1x256xf32, #tpu.memory_space<vmem>>, %arg9: memref<1x128xf32, #tpu.memory_space<vmem>>, %arg10: memref<8x128xf32, #tpu.memory_space<vmem>>, %arg11: memref<8x256xf32, #tpu.memory_space<vmem>>) attributes {dimension_semantics = [#tpu.dimension_semantics<parallel>], iteration_bounds = array<i64: 1>, scalar_prefetch = 0 : i64, scratch_operands = 0 : i64, tpu.core_type = #tpu.core_type<tc>, window_params = [{transform_indices = @transform_0, window_bounds = array<i64: 8, 256>}, {pipeline_mode = #tpu.pipeline_mode<synchronous>, transform_indices = @transform_1, window_bounds = array<i64: 256, 128>}, {pipeline_mode = #tpu.pipeline_mode<synchronous>, transform_indices = @transform_2, window_bounds = array<i64: 128, 128>}, {pipeline_mode = #tpu.pipeline_mode<synchronous>, transform_indices = @transform_3, window_bounds = array<i64: 1, 128>}, {pipeline_mode = #tpu.pipeline_mode<synchronous>, transform_indices = @transform_4, window_bounds = array<i64: 1, 128>}, {pipeline_mode = #tpu.pipeline_mode<synchronous>, transform_indices = @transform_5, window_bounds = array<i64: 128, 256>}, {pipeline_mode = #tpu.pipeline_mode<synchronous>, transform_indices = @transform_6, window_bounds = array<i64: 128, 128>}, {pipeline_mode = #tpu.pipeline_mode<synchronous>, transform_indices = @transform_7, window_bounds = array<i64: 1, 256>}, {pipeline_mode = #tpu.pipeline_mode<synchronous>, transform_indices = @transform_8, window_bounds = array<i64: 1, 128>}, {transform_indices = @transform_9, window_bounds = array<i64: 8, 128>}, {transform_indices = @transform_10, window_bounds = array<i64: 8, 256>}]} {
    %c0 = arith.constant 0 : index
    %c0_0 = arith.constant 0 : index
    %0 = vector.load %arg1[%c0, %c0_0] : memref<8x256xf32, #tpu.memory_space<vmem>>, vector<8x256xf32>
    %c0_1 = arith.constant 0 : index
    %c0_2 = arith.constant 0 : index
    %1 = vector.load %arg2[%c0_1, %c0_2] : memref<256x128xf32, #tpu.memory_space<vmem>>, vector<256x128xf32>
    %cst = arith.constant dense<0.000000e+00> : vector<8x128xf32>
    %2 = tpu.matmul %0, %1, %cst {dimension_numbers = #tpu.dot_dimension_numbers<[1], [0], [0], [1], [0, 0, 1, 1], [], []>} : vector<8x256xf32>, vector<256x128xf32>, vector<8x128xf32> -> vector<8x128xf32>
    %c0_3 = arith.constant 0 : index
    %c0_4 = arith.constant 0 : index
    %3 = vector.load %arg4[%c0_3, %c0_4] : memref<1x128xf32, #tpu.memory_space<vmem>>, vector<1x128xf32>
    %4 = vector.broadcast %3 : vector<1x128xf32> to vector<8x128xf32>
    %5 = arith.addf %2, %4 : vector<8x128xf32>
    %cst_5 = arith.constant 0.000000e+00 : f32
    %6 = vector.broadcast %cst_5 : f32 to vector<8x128xf32>
    %7 = arith.maximumf %5, %6 : vector<8x128xf32>
    %cst_6 = arith.constant 5.000000e-01 : f32
    %8 = vector.broadcast %cst_6 : f32 to vector<8x128xf32>
    %9 = arith.subf %5, %8 : vector<8x128xf32>
    %cst_7 = arith.constant 0.000000e+00 : f32
    %10 = vector.broadcast %cst_7 : f32 to vector<8x128xf32>
    %11 = arith.maximumf %9, %10 : vector<8x128xf32>
    %12 = arith.mulf %7, %7 : vector<8x128xf32>
    %13 = arith.mulf %11, %11 : vector<8x128xf32>
    %14 = arith.subf %12, %13 : vector<8x128xf32>
    %c0_8 = arith.constant 0 : index
    %c0_9 = arith.constant 0 : index
    %15 = vector.load %arg3[%c0_8, %c0_9] : memref<128x128xf32, #tpu.memory_space<vmem>>, vector<128x128xf32>
    %cst_10 = arith.constant dense<0.000000e+00> : vector<8x128xf32>
    %16 = tpu.matmul %14, %15, %cst_10 {dimension_numbers = #tpu.dot_dimension_numbers<[1], [0], [0], [1], [0, 0, 1, 1], [], []>} : vector<8x128xf32>, vector<128x128xf32>, vector<8x128xf32> -> vector<8x128xf32>
    %c0_11 = arith.constant 0 : index
    %c0_12 = arith.constant 0 : index
    %17 = vector.load %arg5[%c0_11, %c0_12] : memref<1x128xf32, #tpu.memory_space<vmem>>, vector<1x128xf32>
    %18 = vector.broadcast %17 : vector<1x128xf32> to vector<8x128xf32>
    %19 = arith.addf %16, %18 : vector<8x128xf32>
    %c0_13 = arith.constant 0 : index
    %c0_14 = arith.constant 0 : index
    %20 = vector.load %arg10[%c0_13, %c0_14] : memref<8x128xf32, #tpu.memory_space<vmem>>, vector<8x128xf32>
    tpu.vector_store %arg10[%c0_13, %c0_14], %19 {strides = array<i32>} : memref<8x128xf32, #tpu.memory_space<vmem>>, vector<8x128xf32>,
    %c0_15 = arith.constant 0 : index
    %c0_16 = arith.constant 0 : index
    %21 = vector.load %arg7[%c0_15, %c0_16] : memref<128x128xf32, #tpu.memory_space<vmem>>, vector<128x128xf32>
    %cst_17 = arith.constant dense<0.000000e+00> : vector<8x128xf32>
    %22 = tpu.matmul %19, %21, %cst_17 {dimension_numbers = #tpu.dot_dimension_numbers<[1], [0], [0], [1], [0, 0, 1, 1], [], []>} : vector<8x128xf32>, vector<128x128xf32>, vector<8x128xf32> -> vector<8x128xf32>
    %c0_18 = arith.constant 0 : index
    %c0_19 = arith.constant 0 : index
    %23 = vector.load %arg9[%c0_18, %c0_19] : memref<1x128xf32, #tpu.memory_space<vmem>>, vector<1x128xf32>
    %24 = vector.broadcast %23 : vector<1x128xf32> to vector<8x128xf32>
    %25 = arith.addf %22, %24 : vector<8x128xf32>
    %cst_20 = arith.constant 0.000000e+00 : f32
    %26 = vector.broadcast %cst_20 : f32 to vector<8x128xf32>
    %27 = arith.maximumf %25, %26 : vector<8x128xf32>
    %cst_21 = arith.constant 5.000000e-01 : f32
    %28 = vector.broadcast %cst_21 : f32 to vector<8x128xf32>
    %29 = arith.subf %25, %28 : vector<8x128xf32>
    %cst_22 = arith.constant 0.000000e+00 : f32
    %30 = vector.broadcast %cst_22 : f32 to vector<8x128xf32>
    %31 = arith.maximumf %29, %30 : vector<8x128xf32>
    %32 = arith.mulf %27, %27 : vector<8x128xf32>
    %33 = arith.mulf %31, %31 : vector<8x128xf32>
    %34 = arith.subf %32, %33 : vector<8x128xf32>
    %c0_23 = arith.constant 0 : index
    %c0_24 = arith.constant 0 : index
    %35 = vector.load %arg6[%c0_23, %c0_24] : memref<128x256xf32, #tpu.memory_space<vmem>>, vector<128x256xf32>
    %cst_25 = arith.constant dense<0.000000e+00> : vector<8x256xf32>
    %36 = tpu.matmul %34, %35, %cst_25 {dimension_numbers = #tpu.dot_dimension_numbers<[1], [0], [0], [1], [0, 0, 1, 1], [], []>} : vector<8x128xf32>, vector<128x256xf32>, vector<8x256xf32> -> vector<8x256xf32>
    %c0_26 = arith.constant 0 : index
    %c0_27 = arith.constant 0 : index
    %37 = vector.load %arg8[%c0_26, %c0_27] : memref<1x256xf32, #tpu.memory_space<vmem>>, vector<1x256xf32>
    %38 = vector.broadcast %37 : vector<1x256xf32> to vector<8x256xf32>
    %39 = arith.addf %36, %38 : vector<8x256xf32>
    %c0_28 = arith.constant 0 : index
    %c0_29 = arith.constant 0 : index
    %40 = vector.load %arg11[%c0_28, %c0_29] : memref<8x256xf32, #tpu.memory_space<vmem>>, vector<8x256xf32>
    tpu.vector_store %arg11[%c0_28, %c0_29], %39 {strides = array<i32>} : memref<8x256xf32, #tpu.memory_space<vmem>>, vector<8x256xf32>,
    return
  }
  func.func @transform_0(%arg0: i32) -> (i32, i32) {
    %c0_i32 = arith.constant 0 : i32
    %c0_i32_0 = arith.constant 0 : i32
    return %arg0, %c0_i32 : i32, i32
  }
  func.func @transform_1(%arg0: i32) -> (i32, i32) {
    %c0_i32 = arith.constant 0 : i32
    %c0_i32_0 = arith.constant 0 : i32
    %c0_i32_1 = arith.constant 0 : i32
    return %c0_i32, %c0_i32_0 : i32, i32
  }
  func.func @transform_2(%arg0: i32) -> (i32, i32) {
    %c0_i32 = arith.constant 0 : i32
    %c0_i32_0 = arith.constant 0 : i32
    %c0_i32_1 = arith.constant 0 : i32
    return %c0_i32, %c0_i32_0 : i32, i32
  }
  func.func @transform_3(%arg0: i32) -> (i32, i32) {
    %c0_i32 = arith.constant 0 : i32
    %c0_i32_0 = arith.constant 0 : i32
    %c0_i32_1 = arith.constant 0 : i32
    return %c0_i32, %c0_i32_0 : i32, i32
  }
  func.func @transform_4(%arg0: i32) -> (i32, i32) {
    %c0_i32 = arith.constant 0 : i32
    %c0_i32_0 = arith.constant 0 : i32
    %c0_i32_1 = arith.constant 0 : i32
    return %c0_i32, %c0_i32_0 : i32, i32
  }
  func.func @transform_5(%arg0: i32) -> (i32, i32) {
    %c0_i32 = arith.constant 0 : i32
    %c0_i32_0 = arith.constant 0 : i32
    %c0_i32_1 = arith.constant 0 : i32
    return %c0_i32, %c0_i32_0 : i32, i32
  }
  func.func @transform_6(%arg0: i32) -> (i32, i32) {
    %c0_i32 = arith.constant 0 : i32
    %c0_i32_0 = arith.constant 0 : i32
    %c0_i32_1 = arith.constant 0 : i32
    return %c0_i32, %c0_i32_0 : i32, i32
  }
  func.func @transform_7(%arg0: i32) -> (i32, i32) {
    %c0_i32 = arith.constant 0 : i32
    %c0_i32_0 = arith.constant 0 : i32
    %c0_i32_1 = arith.constant 0 : i32
    return %c0_i32, %c0_i32_0 : i32, i32
  }
  func.func @transform_8(%arg0: i32) -> (i32, i32) {
    %c0_i32 = arith.constant 0 : i32
    %c0_i32_0 = arith.constant 0 : i32
    %c0_i32_1 = arith.constant 0 : i32
    return %c0_i32, %c0_i32_0 : i32, i32
  }
  func.func @transform_9(%arg0: i32) -> (i32, i32) {
    %c0_i32 = arith.constant 0 : i32
    %c0_i32_0 = arith.constant 0 : i32
    return %arg0, %c0_i32 : i32, i32
  }
  func.func @transform_10(%arg0: i32) -> (i32, i32) {
    %c0_i32 = arith.constant 0 : i32
    %c0_i32_0 = arith.constant 0 : i32
    return %arg0, %c0_i32 : i32, i32
  }
}

</mosaic_0001>

<llo_original>
// kernel: simple_ae_forward.1
$region0: #{simple_ae_forward.1}
  #allocation0 [shape = 'u32[]', space=smem, size = 0x4, offset = 0x4, fixed_abs, tag = 'smem constant byte address 0x4 - core index']
  #allocation1 [shape = 'u32[144,128]{1,0:T(1,128)}', space=vmem, size = 0x12000, scoped, tag = 'internal scratch']
  %s0 = inlined_call_operand.vmem [shape: f32[8,256], index: 0, kind: input, shape index: {}]
  %s1 = inlined_call_operand.vmem [shape: f32[256,128], index: 1, kind: input, shape index: {}]
  %s2 = inlined_call_operand.vmem [shape: f32[128,128], index: 2, kind: input, shape index: {}]
  %s3 = inlined_call_operand.vmem [shape: f32[1,128], index: 3, kind: input, shape index: {}]
  %s4 = inlined_call_operand.vmem [shape: f32[1,128], index: 4, kind: input, shape index: {}]
  %s5 = inlined_call_operand.vmem [shape: f32[128,256], index: 5, kind: input, shape index: {}]
  %s6 = inlined_call_operand.vmem [shape: f32[128,128], index: 6, kind: input, shape index: {}]
  %s7 = inlined_call_operand.vmem [shape: f32[1,256], index: 7, kind: input, shape index: {}]
  %s8 = inlined_call_operand.vmem [shape: f32[1,128], index: 8, kind: input, shape index: {}]
  %s9 = inlined_call_operand.hbm [shape: f32[8,128], index: 9, kind: output, shape index: {0}]
  %s10 = inlined_call_operand.vmem [shape: f32[8,256], index: 10, kind: output, shape index: {1}]
  %11 = xla_tuple %s9, %s10
  %s12 = sld [smem:[#allocation0]]
  $region54: #{simple_ae_forward.1} parent=0
    _
  %s14 = ssub.s32 1, %s12
  %s15 = scalar_select 0, %s14, %s12
  $region1: #{simple_ae_forward.1} parent=0
    #allocation2 [shape = 'u8[4096]{0}', space=vmem, size = 0x1000, scoped, tag = 'output window, operand 0, single buffered']
    #allocation3 [shape = 's32[1]{0}', space=sflag, size = 0x4, scoped, tag = 'scoped memory for simple_ae_forward.1']
    %16 = vsyncpa [#allocation3], 0
    // Predicated region
    $region2: #{simple_ae_forward.1} parent=1 // pred_check
      _
    $region3: #{simple_ae_forward.1} parent=1 // pred_check_branch
      %18 = sbr.rel (0) target = $region5
    $region4: #{simple_ae_forward.1} parent=1 // pred_region
      _
    $region5: #{simple_ae_forward.1} parent=1 // pred_fallthru
      _
    // Predicated region
    $region6: #{simple_ae_forward.1} parent=1 // pred_check
      _
    $region7: #{simple_ae_forward.1} parent=1 // pred_check_branch
      %20 = sbr.rel (0) target = $region9
    $region8: #{simple_ae_forward.1} parent=1 // pred_region
      _
    $region9: #{simple_ae_forward.1} parent=1 // pred_fallthru
      _
    // Predicated region
    $region10: #{simple_ae_forward.1} parent=1 // pred_check
      _
    $region11: #{simple_ae_forward.1} parent=1 // pred_check_branch
      %22 = sbr.rel (0) target = $region13
    $region12: #{simple_ae_forward.1} parent=1 // pred_region
      _
    $region13: #{simple_ae_forward.1} parent=1 // pred_fallthru
      _
    // Predicated region
    $region14: #{simple_ae_forward.1} parent=1 // pred_check
      _
    $region15: #{simple_ae_forward.1} parent=1 // pred_check_branch
      %24 = sbr.rel (0) target = $region17
    $region16: #{simple_ae_forward.1} parent=1 // pred_region
      _
    $region17: #{simple_ae_forward.1} parent=1 // pred_fallthru
      _
    // Predicated region
    $region18: #{simple_ae_forward.1} parent=1 // pred_check
      _
    $region19: #{simple_ae_forward.1} parent=1 // pred_check_branch
      %26 = sbr.rel (0) target = $region21
    $region20: #{simple_ae_forward.1} parent=1 // pred_region
      _
    $region21: #{simple_ae_forward.1} parent=1 // pred_fallthru
      _
    // Predicated region
    $region22: #{simple_ae_forward.1} parent=1 // pred_check
      _
    $region23: #{simple_ae_forward.1} parent=1 // pred_check_branch
      %28 = sbr.rel (0) target = $region25
    $region24: #{simple_ae_forward.1} parent=1 // pred_region
      _
    $region25: #{simple_ae_forward.1} parent=1 // pred_fallthru
      _
    // Predicated region
    $region26: #{simple_ae_forward.1} parent=1 // pred_check
      _
    $region27: #{simple_ae_forward.1} parent=1 // pred_check_branch
      %30 = sbr.rel (0) target = $region29
    $region28: #{simple_ae_forward.1} parent=1 // pred_region
      _
    $region29: #{simple_ae_forward.1} parent=1 // pred_fallthru
      _
    // Predicated region
    $region30: #{simple_ae_forward.1} parent=1 // pred_check
      _
    $region31: #{simple_ae_forward.1} parent=1 // pred_check_branch
      %32 = sbr.rel (0) target = $region33
    $region32: #{simple_ae_forward.1} parent=1 // pred_region
      _
    $region33: #{simple_ae_forward.1} parent=1 // pred_fallthru
      _
    // Predicated region
    $region34: #{simple_ae_forward.1} parent=1 // pred_check
      _
    $region35: #{simple_ae_forward.1} parent=1 // pred_check_branch
      %34 = sbr.rel (0) target = $region37
    $region36: #{simple_ae_forward.1} parent=1 // pred_region
      _
    $region37: #{simple_ae_forward.1} parent=1 // pred_fallthru
      _
    %v35 = vld [vmem:[%s0] sm:$0xff]
    %v36 = vld [vmem:[%s0 + $0x8] sm:$0xff]
    %v37 = vld [vmem:[%s1] sm:$0xff]
    %v38 = vld [vmem:[%s1 + $0x8] sm:$0xff]
    %v39 = vld [vmem:[%s1 + $0x10] sm:$0xff]
    %v40 = vld [vmem:[%s1 + $0x18] sm:$0xff]
    %v41 = vld [vmem:[%s1 + $0x20] sm:$0xff]
    %v42 = vld [vmem:[%s1 + $0x28] sm:$0xff]
    %v43 = vld [vmem:[%s1 + $0x30] sm:$0xff]
    %v44 = vld [vmem:[%s1 + $0x38] sm:$0xff]
    %v45 = vld [vmem:[%s1 + $0x40] sm:$0xff]
    %v46 = vld [vmem:[%s1 + $0x48] sm:$0xff]
    %v47 = vld [vmem:[%s1 + $0x50] sm:$0xff]
    %v48 = vld [vmem:[%s1 + $0x58] sm:$0xff]
    %v49 = vld [vmem:[%s1 + $0x60] sm:$0xff]
    %v50 = vld [vmem:[%s1 + $0x68] sm:$0xff]
    %v51 = vld [vmem:[%s1 + $0x70] sm:$0xff]
    %v52 = vld [vmem:[%s1 + $0x78] sm:$0xff]
    %v53 = vld [vmem:[%s1 + $0x80] sm:$0xff]
    %v54 = vld [vmem:[%s1 + $0x88] sm:$0xff]
    %v55 = vld [vmem:[%s1 + $0x90] sm:$0xff]
    %v56 = vld [vmem:[%s1 + $0x98] sm:$0xff]
    %v57 = vld [vmem:[%s1 + $0xa0] sm:$0xff]
    %v58 = vld [vmem:[%s1 + $0xa8] sm:$0xff]
    %v59 = vld [vmem:[%s1 + $0xb0] sm:$0xff]
    %v60 = vld [vmem:[%s1 + $0xb8] sm:$0xff]
    %v61 = vld [vmem:[%s1 + $0xc0] sm:$0xff]
    %v62 = vld [vmem:[%s1 + $0xc8] sm:$0xff]
    %v63 = vld [vmem:[%s1 + $0xd0] sm:$0xff]
    %v64 = vld [vmem:[%s1 + $0xd8] sm:$0xff]
    %v65 = vld [vmem:[%s1 + $0xe0] sm:$0xff]
    %v66 = vld [vmem:[%s1 + $0xe8] sm:$0xff]
    %v67 = vld [vmem:[%s1 + $0xf0] sm:$0xff]
    %v68 = vld [vmem:[%s1 + $0xf8] sm:$0xff]
    %v69 = vld [vmem:[%s3] sm:$0x1]
    %v71 = vlaneseq
    %v72 = vshrl.u32 %v71, 7
    %v73 = vsub.s32 0, %v72
    %v74 = vrot.slane %v69, %v73
    %76 = vmatprep.subr.mxu0 0.0
    %77 = vmatpush1.msra.mxu0 %v37
    %78 = vmatprep.subr.mxu0 0.0
    %79 = vmatpush1.msra.mxu0 %v38
    %80 = vmatprep.subr.mxu0 0.0
    %81 = vmatpush1.msra.mxu0 %v39
    %82 = vmatprep.subr.mxu0 0.0
    %83 = vmatpush1.msra.mxu0 %v40
    %84 = vmatprep.subr.mxu0 0.0
    %85 = vmatpush1.msra.mxu0 %v41
    %86 = vmatprep.subr.mxu0 0.0
    %87 = vmatpush1.msra.mxu0 %v42
    %88 = vmatprep.subr.mxu0 0.0
    %89 = vmatpush1.msra.mxu0 %v43
    %90 = vmatprep.subr.mxu0 0.0
    %91 = vmatpush1.msra.mxu0 %v44
    %92 = vmatprep.subr.mxu0 0.0
    %93 = vmatpush1.msra.mxu0 %v45
    %94 = vmatprep.subr.mxu0 0.0
    %95 = vmatpush1.msra.mxu0 %v46
    %96 = vmatprep.subr.mxu0 0.0
    %97 = vmatpush1.msra.mxu0 %v47
    %98 = vmatprep.subr.mxu0 0.0
    %99 = vmatpush1.msra.mxu0 %v48
    %100 = vmatprep.subr.mxu0 0.0
    %101 = vmatpush1.msra.mxu0 %v49
    %102 = vmatprep.subr.mxu0 0.0
    %103 = vmatpush1.msra.mxu0 %v50
    %104 = vmatprep.subr.mxu0 0.0
    %105 = vmatpush1.msra.mxu0 %v51
    %106 = vmatprep.subr.mxu0 0.0
    %107 = vmatpush1.msra.mxu0 %v52
    %108 = vmatprep.subr.mxu0 0.0
    %109 = vmatpush1.msra.mxu0 %v53
    %110 = vmatprep.subr.mxu0 0.0
    %111 = vmatpush1.msra.mxu0 %v54
    %112 = vmatprep.subr.mxu0 0.0
    %113 = vmatpush1.msra.mxu0 %v55
    %114 = vmatprep.subr.mxu0 0.0
    %115 = vmatpush1.msra.mxu0 %v56
    %116 = vmatprep.subr.mxu0 0.0
    %117 = vmatpush1.msra.mxu0 %v57
    %118 = vmatprep.subr.mxu0 0.0
    %119 = vmatpush1.msra.mxu0 %v58
    %120 = vmatprep.subr.mxu0 0.0
    %121 = vmatpush1.msra.mxu0 %v59
    %122 = vmatprep.subr.mxu0 0.0
    %123 = vmatpush1.msra.mxu0 %v60
    %124 = vmatprep.subr.mxu0 0.0
    %125 = vmatpush1.msra.mxu0 %v61
    %126 = vmatprep.subr.mxu0 0.0
    %127 = vmatpush1.msra.mxu0 %v62
    %128 = vmatprep.subr.mxu0 0.0
    %129 = vmatpush1.msra.mxu0 %v63
    %130 = vmatprep.subr.mxu0 0.0
    %131 = vmatpush1.msra.mxu0 %v64
    %132 = vmatprep.subr.mxu0 0.0
    %133 = vmatpush1.msra.mxu0 %v65
    %134 = vmatprep.subr.mxu0 0.0
    %135 = vmatpush1.msra.mxu0 %v66
    %136 = vmatprep.subr.mxu0 0.0
    %137 = vmatpush1.msra.mxu0 %v67
    %138 = vmatprep.subr.mxu0 0.0
    %139 = vmatpush1.msra.mxu0 %v68
    %140 = vmatprep.mubr.f32.mxu0 %v36
    %141 = vmatmul.mubr.f32.gmra.mrb[0].mxu0 %v35
    %v142 = vpop.f32.mrb[0].mxu0
    %v143 = vadd.f32 %v74, %v142
    %v144 = vpop.f32.mrb[0].mxu0
    %145 = vdwg.mxu0
    %v146 = vmax.f32 %v143, 0.0
    %v147 = vsub.f32 %v143, 0.5
    %v148 = vmax.f32 %v147, 0.0
    %v149 = vmul.f32 %v146, %v146
    %v150 = vmul.f32 %v148, %v148
    %v151 = vsub.f32 %v149, %v150
    %v152 = vld [vmem:[%s2] sm:$0xff]
    %v153 = vld [vmem:[%s2 + $0x8] sm:$0xff]
    %v154 = vld [vmem:[%s2 + $0x10] sm:$0xff]
    %v155 = vld [vmem:[%s2 + $0x18] sm:$0xff]
    %v156 = vld [vmem:[%s2 + $0x20] sm:$0xff]
    %v157 = vld [vmem:[%s2 + $0x28] sm:$0xff]
    %v158 = vld [vmem:[%s2 + $0x30] sm:$0xff]
    %v159 = vld [vmem:[%s2 + $0x38] sm:$0xff]
    %v160 = vld [vmem:[%s2 + $0x40] sm:$0xff]
    %v161 = vld [vmem:[%s2 + $0x48] sm:$0xff]
    %v162 = vld [vmem:[%s2 + $0x50] sm:$0xff]
    %v163 = vld [vmem:[%s2 + $0x58] sm:$0xff]
    %v164 = vld [vmem:[%s2 + $0x60] sm:$0xff]
    %v165 = vld [vmem:[%s2 + $0x68] sm:$0xff]
    %v166 = vld [vmem:[%s2 + $0x70] sm:$0xff]
    %v167 = vld [vmem:[%s2 + $0x78] sm:$0xff]
    %v168 = vld [vmem:[%s4] sm:$0x1]
    %v170 = vlaneseq
    %v171 = vshrl.u32 %v170, 7
    %v172 = vsub.s32 0, %v171
    %v173 = vrot.slane %v168, %v172
    %175 = vmatprep.subr.mxu0 0.0
    %176 = vmatpush1.msra.mxu0 %v152
    %177 = vmatprep.subr.mxu0 0.0
    %178 = vmatpush1.msra.mxu0 %v153
    %179 = vmatprep.subr.mxu0 0.0
    %180 = vmatpush1.msra.mxu0 %v154
    %181 = vmatprep.subr.mxu0 0.0
    %182 = vmatpush1.msra.mxu0 %v155
    %183 = vmatprep.subr.mxu0 0.0
    %184 = vmatpush1.msra.mxu0 %v156
    %185 = vmatprep.subr.mxu0 0.0
    %186 = vmatpush1.msra.mxu0 %v157
    %187 = vmatprep.subr.mxu0 0.0
    %188 = vmatpush1.msra.mxu0 %v158
    %189 = vmatprep.subr.mxu0 0.0
    %190 = vmatpush1.msra.mxu0 %v159
    %191 = vmatprep.subr.mxu0 0.0
    %192 = vmatpush1.msra.mxu0 %v160
    %193 = vmatprep.subr.mxu0 0.0
    %194 = vmatpush1.msra.mxu0 %v161
    %195 = vmatprep.subr.mxu0 0.0
    %196 = vmatpush1.msra.mxu0 %v162
    %197 = vmatprep.subr.mxu0 0.0
    %198 = vmatpush1.msra.mxu0 %v163
    %199 = vmatprep.subr.mxu0 0.0
    %200 = vmatpush1.msra.mxu0 %v164
    %201 = vmatprep.subr.mxu0 0.0
    %202 = vmatpush1.msra.mxu0 %v165
    %203 = vmatprep.subr.mxu0 0.0
    %204 = vmatpush1.msra.mxu0 %v166
    %205 = vmatprep.subr.mxu0 0.0
    %206 = vmatpush1.msra.mxu0 %v167
    %207 = vmatprep.subr.mxu0 0.0
    %208 = vmatpush1.msra.mxu0 0.0
    %209 = vmatprep.subr.mxu0 0.0
    %210 = vmatpush1.msra.mxu0 0.0
    %211 = vmatprep.subr.mxu0 0.0
    %212 = vmatpush1.msra.mxu0 0.0
    %213 = vmatprep.subr.mxu0 0.0
    %214 = vmatpush1.msra.mxu0 0.0
    %215 = vmatprep.subr.mxu0 0.0
    %216 = vmatpush1.msra.mxu0 0.0
    %217 = vmatprep.subr.mxu0 0.0
    %218 = vmatpush1.msra.mxu0 0.0
    %219 = vmatprep.subr.mxu0 0.0
    %220 = vmatpush1.msra.mxu0 0.0
    %221 = vmatprep.subr.mxu0 0.0
    %222 = vmatpush1.msra.mxu0 0.0
    %223 = vmatprep.subr.mxu0 0.0
    %224 = vmatpush1.msra.mxu0 0.0
    %225 = vmatprep.subr.mxu0 0.0
    %226 = vmatpush1.msra.mxu0 0.0
    %227 = vmatprep.subr.mxu0 0.0
    %228 = vmatpush1.msra.mxu0 0.0
    %229 = vmatprep.subr.mxu0 0.0
    %230 = vmatpush1.msra.mxu0 0.0
    %231 = vmatprep.subr.mxu0 0.0
    %232 = vmatpush1.msra.mxu0 0.0
    %233 = vmatprep.subr.mxu0 0.0
    %234 = vmatpush1.msra.mxu0 0.0
    %235 = vmatprep.subr.mxu0 0.0
    %236 = vmatpush1.msra.mxu0 0.0
    %237 = vmatprep.subr.mxu0 0.0
    %238 = vmatpush1.msra.mxu0 0.0
    %239 = vmatprep.mubr.f32.mxu0 0.0
    %240 = vmatmul.mubr.f32.gmra.mrb[0].mxu0 %v151
    %v241 = vpop.f32.mrb[0].mxu0
    %v242 = vadd.f32 %v173, %v241
    %v243 = vpop.f32.mrb[0].mxu0
    %244 = vdwg.mxu0
    %245 = vst [vmem:[#allocation2] sm:$0xff] %v242
    %v246 = vld [vmem:[%s6] sm:$0xff]
    %v247 = vld [vmem:[%s6 + $0x8] sm:$0xff]
    %v248 = vld [vmem:[%s6 + $0x10] sm:$0xff]
    %v249 = vld [vmem:[%s6 + $0x18] sm:$0xff]
    %v250 = vld [vmem:[%s6 + $0x20] sm:$0xff]
    %v251 = vld [vmem:[%s6 + $0x28] sm:$0xff]
    %v252 = vld [vmem:[%s6 + $0x30] sm:$0xff]
    %v253 = vld [vmem:[%s6 + $0x38] sm:$0xff]
    %v254 = vld [vmem:[%s6 + $0x40] sm:$0xff]
    %v255 = vld [vmem:[%s6 + $0x48] sm:$0xff]
    %v256 = vld [vmem:[%s6 + $0x50] sm:$0xff]
    %v257 = vld [vmem:[%s6 + $0x58] sm:$0xff]
    %v258 = vld [vmem:[%s6 + $0x60] sm:$0xff]
    %v259 = vld [vmem:[%s6 + $0x68] sm:$0xff]
    %v260 = vld [vmem:[%s6 + $0x70] sm:$0xff]
    %v261 = vld [vmem:[%s6 + $0x78] sm:$0xff]
    %v262 = vld [vmem:[%s8] sm:$0x1]
    %v264 = vlaneseq
    %v265 = vshrl.u32 %v264, 7
    %v266 = vsub.s32 0, %v265
    %v267 = vrot.slane %v262, %v266
    %269 = vmatprep.subr.mxu0 0.0
    %270 = vmatpush1.msra.mxu0 %v246
    %271 = vmatprep.subr.mxu0 0.0
    %272 = vmatpush1.msra.mxu0 %v247
    %273 = vmatprep.subr.mxu0 0.0
    %274 = vmatpush1.msra.mxu0 %v248
    %275 = vmatprep.subr.mxu0 0.0
    %276 = vmatpush1.msra.mxu0 %v249
    %277 = vmatprep.subr.mxu0 0.0
    %278 = vmatpush1.msra.mxu0 %v250
    %279 = vmatprep.subr.mxu0 0.0
    %280 = vmatpush1.msra.mxu0 %v251
    %281 = vmatprep.subr.mxu0 0.0
    %282 = vmatpush1.msra.mxu0 %v252
    %283 = vmatprep.subr.mxu0 0.0
    %284 = vmatpush1.msra.mxu0 %v253
    %285 = vmatprep.subr.mxu0 0.0
    %286 = vmatpush1.msra.mxu0 %v254
    %287 = vmatprep.subr.mxu0 0.0
    %288 = vmatpush1.msra.mxu0 %v255
    %289 = vmatprep.subr.mxu0 0.0
    %290 = vmatpush1.msra.mxu0 %v256
    %291 = vmatprep.subr.mxu0 0.0
    %292 = vmatpush1.msra.mxu0 %v257
    %293 = vmatprep.subr.mxu0 0.0
    %294 = vmatpush1.msra.mxu0 %v258
    %295 = vmatprep.subr.mxu0 0.0
    %296 = vmatpush1.msra.mxu0 %v259
    %297 = vmatprep.subr.mxu0 0.0
    %298 = vmatpush1.msra.mxu0 %v260
    %299 = vmatprep.subr.mxu0 0.0
    %300 = vmatpush1.msra.mxu0 %v261
    %301 = vmatprep.subr.mxu0 0.0
    %302 = vmatpush1.msra.mxu0 0.0
    %303 = vmatprep.subr.mxu0 0.0
    %304 = vmatpush1.msra.mxu0 0.0
    %305 = vmatprep.subr.mxu0 0.0
    %306 = vmatpush1.msra.mxu0 0.0
    %307 = vmatprep.subr.mxu0 0.0
    %308 = vmatpush1.msra.mxu0 0.0
    %309 = vmatprep.subr.mxu0 0.0
    %310 = vmatpush1.msra.mxu0 0.0
    %311 = vmatprep.subr.mxu0 0.0
    %312 = vmatpush1.msra.mxu0 0.0
    %313 = vmatprep.subr.mxu0 0.0
    %314 = vmatpush1.msra.mxu0 0.0
    %315 = vmatprep.subr.mxu0 0.0
    %316 = vmatpush1.msra.mxu0 0.0
    %317 = vmatprep.subr.mxu0 0.0
    %318 = vmatpush1.msra.mxu0 0.0
    %319 = vmatprep.subr.mxu0 0.0
    %320 = vmatpush1.msra.mxu0 0.0
    %321 = vmatprep.subr.mxu0 0.0
    %322 = vmatpush1.msra.mxu0 0.0
    %323 = vmatprep.subr.mxu0 0.0
    %324 = vmatpush1.msra.mxu0 0.0
    %325 = vmatprep.subr.mxu0 0.0
    %326 = vmatpush1.msra.mxu0 0.0
    %327 = vmatprep.subr.mxu0 0.0
    %328 = vmatpush1.msra.mxu0 0.0
    %329 = vmatprep.subr.mxu0 0.0
    %330 = vmatpush1.msra.mxu0 0.0
    %331 = vmatprep.subr.mxu0 0.0
    %332 = vmatpush1.msra.mxu0 0.0
    %333 = vmatprep.mubr.f32.mxu0 0.0
    %334 = vmatmul.mubr.f32.gmra.mrb[0].mxu0 %v242
    %v335 = vpop.f32.mrb[0].mxu0
    %v336 = vadd.f32 %v267, %v335
    %v337 = vpop.f32.mrb[0].mxu0
    %338 = vdwg.mxu0
    %v339 = vmax.f32 %v336, 0.0
    %v340 = vsub.f32 %v336, 0.5
    %v341 = vmax.f32 %v340, 0.0
    %v342 = vmul.f32 %v339, %v339
    %v343 = vmul.f32 %v341, %v341
    %v344 = vsub.f32 %v342, %v343
    %v345 = vld [vmem:[%s5] sm:$0xff]
    %v346 = vld [vmem:[%s5 + $0x8] sm:$0xff]
    %v347 = vld [vmem:[%s5 + $0x10] sm:$0xff]
    %v348 = vld [vmem:[%s5 + $0x18] sm:$0xff]
    %v349 = vld [vmem:[%s5 + $0x20] sm:$0xff]
    %v350 = vld [vmem:[%s5 + $0x28] sm:$0xff]
    %v351 = vld [vmem:[%s5 + $0x30] sm:$0xff]
    %v352 = vld [vmem:[%s5 + $0x38] sm:$0xff]
    %v353 = vld [vmem:[%s5 + $0x40] sm:$0xff]
    %v354 = vld [vmem:[%s5 + $0x48] sm:$0xff]
    %v355 = vld [vmem:[%s5 + $0x50] sm:$0xff]
    %v356 = vld [vmem:[%s5 + $0x58] sm:$0xff]
    %v357 = vld [vmem:[%s5 + $0x60] sm:$0xff]
    %v358 = vld [vmem:[%s5 + $0x68] sm:$0xff]
    %v359 = vld [vmem:[%s5 + $0x70] sm:$0xff]
    %v360 = vld [vmem:[%s5 + $0x78] sm:$0xff]
    %v361 = vld [vmem:[%s5 + $0x80] sm:$0xff]
    %v362 = vld [vmem:[%s5 + $0x88] sm:$0xff]
    %v363 = vld [vmem:[%s5 + $0x90] sm:$0xff]
    %v364 = vld [vmem:[%s5 + $0x98] sm:$0xff]
    %v365 = vld [vmem:[%s5 + $0xa0] sm:$0xff]
    %v366 = vld [vmem:[%s5 + $0xa8] sm:$0xff]
    %v367 = vld [vmem:[%s5 + $0xb0] sm:$0xff]
    %v368 = vld [vmem:[%s5 + $0xb8] sm:$0xff]
    %v369 = vld [vmem:[%s5 + $0xc0] sm:$0xff]
    %v370 = vld [vmem:[%s5 + $0xc8] sm:$0xff]
    %v371 = vld [vmem:[%s5 + $0xd0] sm:$0xff]
    %v372 = vld [vmem:[%s5 + $0xd8] sm:$0xff]
    %v373 = vld [vmem:[%s5 + $0xe0] sm:$0xff]
    %v374 = vld [vmem:[%s5 + $0xe8] sm:$0xff]
    %v375 = vld [vmem:[%s5 + $0xf0] sm:$0xff]
    %v376 = vld [vmem:[%s5 + $0xf8] sm:$0xff]
    %v377 = vld [vmem:[%s7] sm:$0x3]
    %v379 = vlaneseq
    %v380 = vshrl.u32 %v379, 7
    %v381 = vsub.s32 0, %v380
    %v382 = vrot.slane %v377, %v381
    %v383 = vlaneseq
    %v384 = vshrl.u32 %v383, 7
    %v385 = vsub.s32 1, %v384
    %v386 = vrot.slane %v377, %v385
    %389 = vmatprep.subr.mxu0 %v346
    %390 = vmatpush1.msra.mxu0 %v345
    %391 = vmatprep.subr.mxu0 %v348
    %392 = vmatpush1.msra.mxu0 %v347
    %393 = vmatprep.subr.mxu0 %v350
    %394 = vmatpush1.msra.mxu0 %v349
    %395 = vmatprep.subr.mxu0 %v352
    %396 = vmatpush1.msra.mxu0 %v351
    %397 = vmatprep.subr.mxu0 %v354
    %398 = vmatpush1.msra.mxu0 %v353
    %399 = vmatprep.subr.mxu0 %v356
    %400 = vmatpush1.msra.mxu0 %v355
    %401 = vmatprep.subr.mxu0 %v358
    %402 = vmatpush1.msra.mxu0 %v357
    %403 = vmatprep.subr.mxu0 %v360
    %404 = vmatpush1.msra.mxu0 %v359
    %405 = vmatprep.subr.mxu0 %v362
    %406 = vmatpush1.msra.mxu0 %v361
    %407 = vmatprep.subr.mxu0 %v364
    %408 = vmatpush1.msra.mxu0 %v363
    %409 = vmatprep.subr.mxu0 %v366
    %410 = vmatpush1.msra.mxu0 %v365
    %411 = vmatprep.subr.mxu0 %v368
    %412 = vmatpush1.msra.mxu0 %v367
    %413 = vmatprep.subr.mxu0 %v370
    %414 = vmatpush1.msra.mxu0 %v369
    %415 = vmatprep.subr.mxu0 %v372
    %416 = vmatpush1.msra.mxu0 %v371
    %417 = vmatprep.subr.mxu0 %v374
    %418 = vmatpush1.msra.mxu0 %v373
    %419 = vmatprep.subr.mxu0 %v376
    %420 = vmatpush1.msra.mxu0 %v375
    %421 = vmatprep.subr.mxu0 0.0
    %422 = vmatpush1.msra.mxu0 0.0
    %423 = vmatprep.subr.mxu0 0.0
    %424 = vmatpush1.msra.mxu0 0.0
    %425 = vmatprep.subr.mxu0 0.0
    %426 = vmatpush1.msra.mxu0 0.0
    %427 = vmatprep.subr.mxu0 0.0
    %428 = vmatpush1.msra.mxu0 0.0
    %429 = vmatprep.subr.mxu0 0.0
    %430 = vmatpush1.msra.mxu0 0.0
    %431 = vmatprep.subr.mxu0 0.0
    %432 = vmatpush1.msra.mxu0 0.0
    %433 = vmatprep.subr.mxu0 0.0
    %434 = vmatpush1.msra.mxu0 0.0
    %435 = vmatprep.subr.mxu0 0.0
    %436 = vmatpush1.msra.mxu0 0.0
    %437 = vmatprep.subr.mxu0 0.0
    %438 = vmatpush1.msra.mxu0 0.0
    %439 = vmatprep.subr.mxu0 0.0
    %440 = vmatpush1.msra.mxu0 0.0
    %441 = vmatprep.subr.mxu0 0.0
    %442 = vmatpush1.msra.mxu0 0.0
    %443 = vmatprep.subr.mxu0 0.0
    %444 = vmatpush1.msra.mxu0 0.0
    %445 = vmatprep.subr.mxu0 0.0
    %446 = vmatpush1.msra.mxu0 0.0
    %447 = vmatprep.subr.mxu0 0.0
    %448 = vmatpush1.msra.mxu0 0.0
    %449 = vmatprep.subr.mxu0 0.0
    %450 = vmatpush1.msra.mxu0 0.0
    %451 = vmatprep.subr.mxu0 0.0
    %452 = vmatpush1.msra.mxu0 0.0
    %453 = vmatprep.mubr.f32.mxu0 0.0
    %454 = vmatmul.mubr.f32.gmra.mrb[0].mxu0 %v344
    %v455 = vpop.f32.mrb[0].mxu0
    %v456 = vadd.f32 %v382, %v455
    %v457 = vpop.f32.mrb[0].mxu0
    %v458 = vadd.f32 %v386, %v457
    %459 = vdwg.mxu0
    %460 = vst [vmem:[%s10] sm:$0xff] %v456
    %461 = vst [vmem:[%s10 + $0x8] sm:$0xff] %v458
    // Predicated region
    $region38: #{simple_ae_forward.1} parent=1 // pred_check
      _
    $region39: #{simple_ae_forward.1} parent=1 // pred_check_branch
      %463 = sbr.rel (0) target = $region41
    $region40: #{simple_ae_forward.1} parent=1 // pred_region
      %s465 = ssub.s32 128, 128
      %466 = vsyncadd [#allocation3], %s465
      %s468 = sshll.u32 [#allocation2], 4
      %s469 = int_to_ptr.vmem [resolvable:$true] %s468
      %471 = dma.vmem_to_hbm [thread:$0]  %s469, 128, %s9, [#allocation3]
    $region41: #{simple_ae_forward.1} parent=1 // pred_fallthru
      _
    // Predicated region
    $region42: #{simple_ae_forward.1} parent=1 // pred_check
      _
    $region43: #{simple_ae_forward.1} parent=1 // pred_check_branch
      %473 = sbr.rel (0) target = $region45
    $region44: #{simple_ae_forward.1} parent=1 // pred_region
      _
    $region45: #{simple_ae_forward.1} parent=1 // pred_fallthru
      _
    // Predicated region
    $region46: #{simple_ae_forward.1} parent=1 // pred_check
      _
    $region47: #{simple_ae_forward.1} parent=1 // pred_check_branch
      %475 = sbr.rel (0) target = $region49
    $region48: #{simple_ae_forward.1} parent=1 // pred_region
      %476 = dma.done [#allocation3], 128
    $region49: #{simple_ae_forward.1} parent=1 // pred_fallthru
      _
    // Predicated region
    $region50: #{simple_ae_forward.1} parent=1 // pred_check
      _
    $region51: #{simple_ae_forward.1} parent=1 // pred_check_branch
      %478 = sbr.rel (0) target = $region53
    $region52: #{simple_ae_forward.1} parent=1 // pred_region
      _
    $region53: #{simple_ae_forward.1} parent=1 // pred_fallthru
      _
    %479 = vsyncpa [#allocation3], 1

</llo_original>
